<compile_context>
chip_gen: v5e
topology: v5e:2x2
jax: 0.10.0
libtpu: 0.0.40
codegen_flags: <defaults>
</compile_context>

<pallas_src>
import functools

import jax
import jax.numpy as jnp
from jax.experimental import pallas as pl
from jax.experimental.pallas import tpu as pltpu


def _decoder_kernel(z_ref, w1_ref, b1_ref, w2_ref, b2_ref, w3_ref, b3_ref, o_ref):
    # Compute dtype for the MXU follows the weight dtype (f32 or bf16).
    cdt = w1_ref.dtype
    x = z_ref[...].astype(cdt)

    # Layer 1: linear + ReLU (MXU matmul, f32 accumulate, f32 epilogue)
    h1 = jnp.dot(x, w1_ref[...], preferred_element_type=jnp.float32)
    h1 = jnp.maximum(h1 + b1_ref[...], 0.0)

    # Layer 2: linear + ReLU
    h2 = jnp.dot(h1.astype(cdt), w2_ref[...], preferred_element_type=jnp.float32)
    h2 = jnp.maximum(h2 + b2_ref[...], 0.0)

    # Layer 3: linear + Sigmoid (exp on EUP; numerically stable lowering)
    h3 = jnp.dot(h2.astype(cdt), w3_ref[...], preferred_element_type=jnp.float32)
    h3 = h3 + b3_ref[...]
    o_ref[...] = jax.nn.sigmoid(h3).astype(o_ref.dtype)


def _round_up(x, m):
    return -(-x // m) * m


def _tpu_topology():
    """Best-effort (num_tensorcores, vmem_capacity_bytes) for the local chip."""
    num_tc = 1
    vmem_bytes = 128 << 20  # v5e / v6e
    try:
        kind = jax.devices()[0].device_kind.lower()
        if "v7" in kind:
            num_tc = 2
            vmem_bytes = 64 << 20  # v7x: 64 MiB per TensorCore
    except Exception:
        pass
    try:
        info = pltpu.get_tpu_info()
        vmem_bytes = int(getattr(info, "vmem_capacity_bytes", vmem_bytes))
    except Exception:
        pass
    return num_tc, vmem_bytes


def _choose_batch_tile(B, batch_tile, latent, h1, h2, out, act_bytes, w_bytes,
                       num_tc, budget):
    """Pick a batch tile: big (amortize per-step overhead), multiple of 8,
    >= 2 steps per TensorCore on dual-TC chips, bounded by the VMEM budget."""
    tb = min(batch_tile, B)

    if num_tc > 1:
        # Keep >= 2 grid steps per core so each core's DMA pipelines.
        min_steps = 2 * num_tc
        if B > 8 * min_steps:
            per_step = _round_up(pl.cdiv(B, min_steps), 8)
            tb = min(tb, per_step)

    if tb != B:
        tb = max(8, (tb // 8) * 8)

    def vmem_est(t):
        # Double-buffered z/out streams + f32 intermediates + (worst case
        # double-buffered) resident weights.
        stream = 2 * t * (latent + out) * act_bytes
        inter = t * (h1 + h2 + out) * 4
        return stream + inter + 2 * w_bytes

    while tb > 8 and vmem_est(tb) > budget:
        tb = max(8, ((tb // 2) // 8) * 8)
    return tb


@functools.partial(jax.jit, static_argnames=("batch_tile", "out_dtype"))
def decoder_forward(z, params, *, batch_tile=4096, out_dtype=None):
    """z: (B, latent); params: dict of w1,b1,w2,b2,w3,b3 with weights (in, out).

    The MXU compute dtype follows the weight dtype; pass bf16 params (on any
    of v5e/v6e/v7x) to halve LHS vmatmul pushes and z HBM bytes. Activations
    between layers are cast to the weight dtype; accumulation and the
    bias/ReLU/sigmoid epilogue stay f32. Output dtype defaults to z.dtype
    (pass out_dtype=jnp.bfloat16 to also halve the output writeback stream).
    """
    B, latent = z.shape
    w1, w2, w3 = params["w1"], params["w2"], params["w3"]
    # Biases kept f32 regardless of weight dtype (cast once here, not per step).
    b1 = params["b1"].astype(jnp.float32)
    b2 = params["b2"].astype(jnp.float32)
    b3 = params["b3"].astype(jnp.float32)
    h1_dim, h2_dim, out_dim = w1.shape[1], w2.shape[1], w3.shape[1]

    if out_dtype is None:
        out_dtype = z.dtype

    cdt = w1.dtype                  # compute dtype follows the weights
    z_c = z.astype(cdt)             # halves the z HBM stream on the bf16 path

    # Lane-dense output store: pad out_dim up to a multiple of 128.
    out_pad = _round_up(out_dim, 128)
    if out_pad != out_dim:
        w3 = jnp.pad(w3, ((0, 0), (0, out_pad - out_dim)))
        b3 = jnp.pad(b3, ((0, 0), (0, out_pad - out_dim)))

    num_tc, vmem_bytes = _tpu_topology()
    # Generation-aware per-step budget: ~24 MiB on v7x (64 MiB VMEM/TC),
    # ~56 MiB on v5e/v6e (128 MiB VMEM).
    budget = max(12 << 20, vmem_bytes // 2 - (8 << 20))

    act_bytes = jnp.dtype(cdt).itemsize
    w_bytes = sum(int(p.size) * jnp.dtype(p.dtype).itemsize
                  for p in (w1, b1, w2, b2, w3, b3))
    tb = _choose_batch_tile(B, batch_tile, latent, h1_dim, h2_dim, out_pad,
                            act_bytes, w_bytes, num_tc, budget)

    # Pad the batch so every grid step sees a full tile (no garbage rows
    # through exp/sigmoid; Pallas masks OOB writes either way).
    B_pad = _round_up(B, tb)
    if B_pad != B:
        z_c = jnp.pad(z_c, ((0, B_pad - B), (0, 0)))
    steps = B_pad // tb

    # Explicit scoped-VMEM limit sized from the real footprint (v5e's default
    # is only 16 MiB; v7x physical VMEM is 64 MiB, keep headroom).
    vmem_limit = int(min(vmem_bytes - (4 << 20), budget + (8 << 20)))

    full = lambda i: (0, 0)  # weights / biases: grid-invariant (stay resident)

    out = pl.pallas_call(
        _decoder_kernel,
        out_shape=jax.ShapeDtypeStruct((B_pad, out_pad), out_dtype),
        grid_spec=pltpu.PrefetchScalarGridSpec(
            num_scalar_prefetch=0,
            grid=(steps,),
            in_specs=[
                pl.BlockSpec((tb, latent), lambda i: (i, 0)),   # z tile
                pl.BlockSpec((latent, h1_dim), full),           # w1
                pl.BlockSpec((1, h1_dim), full),                # b1 (f32)
                pl.BlockSpec((h1_dim, h2_dim), full),           # w2
                pl.BlockSpec((1, h2_dim), full),                # b2 (f32)
                pl.BlockSpec((h2_dim, out_pad), full),          # w3
                pl.BlockSpec((1, out_pad), full),               # b3 (f32)
            ],
            out_specs=pl.BlockSpec((tb, out_pad), lambda i: (i, 0)),
        ),
        compiler_params=pltpu.CompilerParams(
            dimension_semantics=("parallel",),
            vmem_limit_bytes=vmem_limit,
        ),
    )(z_c, w1, b1, w2, b2, w3, b3)

    if B_pad != B or out_pad != out_dim:
        out = out[:B, :out_dim]
    return out


def init_decoder_params(key, latent_size, out_size, dtype=jnp.float32):
    """Deterministic init mirroring nn.Linear's default U(-1/sqrt(fan_in), +)."""
    dims = [latent_size, out_size // 4, out_size // 2, out_size]
    params = {}
    for idx, (fin, fout) in enumerate(zip(dims[:-1], dims[1:]), start=1):
        key, kw, kb = jax.random.split(key, 3)
        bound = 1.0 / (fin ** 0.5)
        # stored as (in, out) == PyTorch weight.T
        params[f"w{idx}"] = jax.random.uniform(
            kw, (fin, fout), dtype, minval=-bound, maxval=bound)
        params[f"b{idx}"] = jax.random.uniform(
            kb, (1, fout), dtype, minval=-bound, maxval=bound)
    return params


def decoder_reference(z, params):
    h = jnp.maximum(z @ params["w1"] + params["b1"], 0.0)
    h = jnp.maximum(h @ params["w2"] + params["b2"], 0.0)
    return jax.nn.sigmoid(h @ params["w3"] + params["b3"])


if __name__ == "__main__":
    latent_size = 32
    out_size = 128          # out//4 = 32, out//2 = 64
    batch = 16

    key = jax.random.PRNGKey(0)
    key, kz = jax.random.split(key)
    z = jax.random.normal(kz, (batch, latent_size), jnp.float32)
    params = init_decoder_params(key, latent_size, out_size)

    # f32-weight path (matches the JAX reference under default MXU precision).
    w = jax.block_until_ready(decoder_forward(z, params))
    ref = decoder_reference(z, params)
    assert w.shape == (batch, out_size)
    assert jnp.allclose(w, ref, atol=1e-4, rtol=1e-4)

    # bf16 fast path (recommended default on v5e/v6e/v7x): bf16 weights *and*
    # bf16 activations between layers; f32 accumulate + f32 epilogue.
    params_bf16 = {k: v.astype(jnp.bfloat16) for k, v in params.items()}
    w16 = jax.block_until_ready(decoder_forward(z, params_bf16))
    assert w16.shape == (batch, out_size)
    assert jnp.allclose(w16.astype(jnp.float32), ref, atol=2e-2, rtol=2e-2)

    print("KERNEL_OK")
</pallas_src>

<mosaic_0001>
module attributes {stable_mosaic.version = 11 : i64} {
  func.func @_decoder_kernel(%arg0: i32, %arg1: memref<16x32xf32, #tpu.memory_space<vmem>>, %arg2: memref<32x32xf32, #tpu.memory_space<vmem>>, %arg3: memref<1x32xf32, #tpu.memory_space<vmem>>, %arg4: memref<32x64xf32, #tpu.memory_space<vmem>>, %arg5: memref<1x64xf32, #tpu.memory_space<vmem>>, %arg6: memref<64x128xf32, #tpu.memory_space<vmem>>, %arg7: memref<1x128xf32, #tpu.memory_space<vmem>>, %arg8: memref<16x128xf32, #tpu.memory_space<vmem>>) attributes {dimension_semantics = [#tpu.dimension_semantics<parallel>], iteration_bounds = array<i64: 1>, scalar_prefetch = 0 : i64, scratch_operands = 0 : i64, tpu.core_type = #tpu.core_type<tc>, window_params = [{transform_indices = @transform_0, window_bounds = array<i64: 16, 32>}, {pipeline_mode = #tpu.pipeline_mode<synchronous>, transform_indices = @transform_1, window_bounds = array<i64: 32, 32>}, {pipeline_mode = #tpu.pipeline_mode<synchronous>, transform_indices = @transform_2, window_bounds = array<i64: 1, 32>}, {pipeline_mode = #tpu.pipeline_mode<synchronous>, transform_indices = @transform_3, window_bounds = array<i64: 32, 64>}, {pipeline_mode = #tpu.pipeline_mode<synchronous>, transform_indices = @transform_4, window_bounds = array<i64: 1, 64>}, {pipeline_mode = #tpu.pipeline_mode<synchronous>, transform_indices = @transform_5, window_bounds = array<i64: 64, 128>}, {pipeline_mode = #tpu.pipeline_mode<synchronous>, transform_indices = @transform_6, window_bounds = array<i64: 1, 128>}, {transform_indices = @transform_7, window_bounds = array<i64: 16, 128>}]} {
    %c0 = arith.constant 0 : index
    %c0_0 = arith.constant 0 : index
    %0 = vector.load %arg1[%c0, %c0_0] : memref<16x32xf32, #tpu.memory_space<vmem>>, vector<16x32xf32>
    %c0_1 = arith.constant 0 : index
    %c0_2 = arith.constant 0 : index
    %1 = vector.load %arg2[%c0_1, %c0_2] : memref<32x32xf32, #tpu.memory_space<vmem>>, vector<32x32xf32>
    %cst = arith.constant dense<0.000000e+00> : vector<16x32xf32>
    %2 = tpu.matmul %0, %1, %cst {dimension_numbers = #tpu.dot_dimension_numbers<[1], [0], [0], [1], [0, 0, 1, 1], [], []>} : vector<16x32xf32>, vector<32x32xf32>, vector<16x32xf32> -> vector<16x32xf32>
    %c0_3 = arith.constant 0 : index
    %c0_4 = arith.constant 0 : index
    %3 = vector.load %arg3[%c0_3, %c0_4] : memref<1x32xf32, #tpu.memory_space<vmem>>, vector<1x32xf32>
    %4 = vector.broadcast %3 : vector<1x32xf32> to vector<16x32xf32>
    %5 = arith.addf %2, %4 : vector<16x32xf32>
    %cst_5 = arith.constant 0.000000e+00 : f32
    %6 = vector.broadcast %cst_5 : f32 to vector<16x32xf32>
    %7 = arith.maximumf %5, %6 : vector<16x32xf32>
    %c0_6 = arith.constant 0 : index
    %c0_7 = arith.constant 0 : index
    %8 = vector.load %arg4[%c0_6, %c0_7] : memref<32x64xf32, #tpu.memory_space<vmem>>, vector<32x64xf32>
    %cst_8 = arith.constant dense<0.000000e+00> : vector<16x64xf32>
    %9 = tpu.matmul %7, %8, %cst_8 {dimension_numbers = #tpu.dot_dimension_numbers<[1], [0], [0], [1], [0, 0, 1, 1], [], []>} : vector<16x32xf32>, vector<32x64xf32>, vector<16x64xf32> -> vector<16x64xf32>
    %c0_9 = arith.constant 0 : index
    %c0_10 = arith.constant 0 : index
    %10 = vector.load %arg5[%c0_9, %c0_10] : memref<1x64xf32, #tpu.memory_space<vmem>>, vector<1x64xf32>
    %11 = vector.broadcast %10 : vector<1x64xf32> to vector<16x64xf32>
    %12 = arith.addf %9, %11 : vector<16x64xf32>
    %cst_11 = arith.constant 0.000000e+00 : f32
    %13 = vector.broadcast %cst_11 : f32 to vector<16x64xf32>
    %14 = arith.maximumf %12, %13 : vector<16x64xf32>
    %c0_12 = arith.constant 0 : index
    %c0_13 = arith.constant 0 : index
    %15 = vector.load %arg6[%c0_12, %c0_13] : memref<64x128xf32, #tpu.memory_space<vmem>>, vector<64x128xf32>
    %cst_14 = arith.constant dense<0.000000e+00> : vector<16x128xf32>
    %16 = tpu.matmul %14, %15, %cst_14 {dimension_numbers = #tpu.dot_dimension_numbers<[1], [0], [0], [1], [0, 0, 1, 1], [], []>} : vector<16x64xf32>, vector<64x128xf32>, vector<16x128xf32> -> vector<16x128xf32>
    %c0_15 = arith.constant 0 : index
    %c0_16 = arith.constant 0 : index
    %17 = vector.load %arg7[%c0_15, %c0_16] : memref<1x128xf32, #tpu.memory_space<vmem>>, vector<1x128xf32>
    %18 = vector.broadcast %17 : vector<1x128xf32> to vector<16x128xf32>
    %19 = arith.addf %16, %18 : vector<16x128xf32>
    %20 = arith.negf %19 : vector<16x128xf32>
    %21 = math.exp %20 : vector<16x128xf32>
    %cst_17 = arith.constant 1.000000e+00 : f32
    %22 = vector.broadcast %cst_17 : f32 to vector<16x128xf32>
    %23 = arith.addf %22, %21 : vector<16x128xf32>
    %24 = arith.divf %22, %23 : vector<16x128xf32>
    %c0_18 = arith.constant 0 : index
    %c0_19 = arith.constant 0 : index
    %25 = vector.load %arg8[%c0_18, %c0_19] : memref<16x128xf32, #tpu.memory_space<vmem>>, vector<16x128xf32>
    tpu.vector_store %arg8[%c0_18, %c0_19], %24 {strides = array<i32>} : memref<16x128xf32, #tpu.memory_space<vmem>>, vector<16x128xf32>,
    return
  }
  func.func @transform_0(%arg0: i32) -> (i32, i32) {
    %c0_i32 = arith.constant 0 : i32
    %c0_i32_0 = arith.constant 0 : i32
    return %arg0, %c0_i32 : i32, i32
  }
  func.func @transform_1(%arg0: i32) -> (i32, i32) {
    %c0_i32 = arith.constant 0 : i32
    %c0_i32_0 = arith.constant 0 : i32
    %c0_i32_1 = arith.constant 0 : i32
    return %c0_i32, %c0_i32_0 : i32, i32
  }
  func.func @transform_2(%arg0: i32) -> (i32, i32) {
    %c0_i32 = arith.constant 0 : i32
    %c0_i32_0 = arith.constant 0 : i32
    %c0_i32_1 = arith.constant 0 : i32
    return %c0_i32, %c0_i32_0 : i32, i32
  }
  func.func @transform_3(%arg0: i32) -> (i32, i32) {
    %c0_i32 = arith.constant 0 : i32
    %c0_i32_0 = arith.constant 0 : i32
    %c0_i32_1 = arith.constant 0 : i32
    return %c0_i32, %c0_i32_0 : i32, i32
  }
  func.func @transform_4(%arg0: i32) -> (i32, i32) {
    %c0_i32 = arith.constant 0 : i32
    %c0_i32_0 = arith.constant 0 : i32
    %c0_i32_1 = arith.constant 0 : i32
    return %c0_i32, %c0_i32_0 : i32, i32
  }
  func.func @transform_5(%arg0: i32) -> (i32, i32) {
    %c0_i32 = arith.constant 0 : i32
    %c0_i32_0 = arith.constant 0 : i32
    %c0_i32_1 = arith.constant 0 : i32
    return %c0_i32, %c0_i32_0 : i32, i32
  }
  func.func @transform_6(%arg0: i32) -> (i32, i32) {
    %c0_i32 = arith.constant 0 : i32
    %c0_i32_0 = arith.constant 0 : i32
    %c0_i32_1 = arith.constant 0 : i32
    return %c0_i32, %c0_i32_0 : i32, i32
  }
  func.func @transform_7(%arg0: i32) -> (i32, i32) {
    %c0_i32 = arith.constant 0 : i32
    %c0_i32_0 = arith.constant 0 : i32
    return %arg0, %c0_i32 : i32, i32
  }
}

</mosaic_0001>

<llo_original>
// kernel: decoder_forward.1
$region0: #{decoder_forward.1}
  #allocation0 [shape = 'u32[]', space=smem, size = 0x4, offset = 0x4, fixed_abs, tag = 'smem constant byte address 0x4 - core index']
  #allocation1 [shape = 'u32[72,128]{1,0:T(1,128)}', space=vmem, size = 0x9000, scoped, tag = 'internal scratch']
  %s0 = inlined_call_operand.hbm [shape: f32[16,32], index: 0, kind: input, shape index: {}]
  %s1 = inlined_call_operand.hbm [shape: f32[32,32], index: 1, kind: input, shape index: {}]
  %s2 = inlined_call_operand.hbm [shape: f32[1,32], index: 2, kind: input, shape index: {}]
  %s3 = inlined_call_operand.hbm [shape: f32[32,64], index: 3, kind: input, shape index: {}]
  %s4 = inlined_call_operand.vmem [shape: f32[1,64], index: 4, kind: input, shape index: {}]
  %s5 = inlined_call_operand.hbm [shape: f32[64,128], index: 5, kind: input, shape index: {}]
  %s6 = inlined_call_operand.vmem [shape: f32[1,128], index: 6, kind: input, shape index: {}]
  %s7 = inlined_call_operand.hbm [shape: f32[16,128], index: 7, kind: output, shape index: {}]
  %s8 = sld [smem:[#allocation0]]
  $region58: #{decoder_forward.1} parent=0
    _
  %s10 = ssub.s32 1, %s8
  %s11 = scalar_select 0, %s10, %s8
  $region1: #{decoder_forward.1} parent=0
    #allocation2 [shape = 'u8[8192]{0}', space=vmem, size = 0x2000, scoped, tag = 'input window, operand 0, single buffered']
    #allocation3 [shape = 's32[1]{0}', space=sflag, size = 0x4, scoped, tag = 'scoped memory for decoder_forward.1']
    #allocation4 [shape = 's32[1]{0}', space=sflag, size = 0x4, scoped, tag = 'scoped memory for decoder_forward.1']
    #allocation5 [shape = 'u8[16384]{0}', space=vmem, size = 0x4000, scoped, tag = 'input window, operand 1, single buffered']
    #allocation6 [shape = 's32[1]{0}', space=sflag, size = 0x4, scoped, tag = 'scoped memory for decoder_forward.1']
    #allocation7 [shape = 'u8[512]{0}', space=vmem, size = 0x400, scoped, tag = 'input window, operand 2, single buffered']
    #allocation8 [shape = 'u8[16384]{0}', space=vmem, size = 0x4000, scoped, tag = 'input window, operand 3, single buffered']
    #allocation9 [shape = 's32[1]{0}', space=sflag, size = 0x4, scoped, tag = 'scoped memory for decoder_forward.1']
    #allocation10 [shape = 'u8[32768]{0}', space=vmem, size = 0x8000, scoped, tag = 'input window, operand 5, single buffered']
    #allocation11 [shape = 'u8[8192]{0}', space=vmem, size = 0x2000, scoped, tag = 'output window, operand 0, single buffered']
    %12 = vsyncpa [#allocation3], 0
    %13 = vsyncpa [#allocation6], 0
    %14 = vsyncpa [#allocation9], 0
    %15 = vsyncpa [#allocation4], 0
    // Predicated region
    $region2: #{decoder_forward.1} parent=1 // pred_check
      _
    $region3: #{decoder_forward.1} parent=1 // pred_check_branch
      %17 = sbr.rel (0) target = $region5
    $region4: #{decoder_forward.1} parent=1 // pred_region
      %19 = vsyncadd [#allocation3], 0
      %s20 = sshll.u32 %s0, 4
      %s21 = int_to_ptr.hbm [resolvable:$true] %s20
      %s22 = sshll.u32 [#allocation2], 4
      %s23 = int_to_ptr.vmem [resolvable:$true] %s22
      %28 = dma.hbm_to_vmem [thread:$0]  %s21, 256, %s23, [#allocation3], 128, 128, 8
    $region5: #{decoder_forward.1} parent=1 // pred_fallthru
      _
    // Predicated region
    $region6: #{decoder_forward.1} parent=1 // pred_check
      _
    $region7: #{decoder_forward.1} parent=1 // pred_check_branch
      %30 = sbr.rel (0) target = $region9
    $region8: #{decoder_forward.1} parent=1 // pred_region
      %32 = vsyncadd [#allocation6], 0
      %s33 = sshll.u32 %s1, 4
      %s34 = int_to_ptr.hbm [resolvable:$true] %s33
      %s35 = sshll.u32 [#allocation5], 4
      %s36 = int_to_ptr.vmem [resolvable:$true] %s35
      %41 = dma.hbm_to_vmem [thread:$0]  %s34, 512, %s36, [#allocation6], 128, 128, 8
    $region9: #{decoder_forward.1} parent=1 // pred_fallthru
      _
    // Predicated region
    $region10: #{decoder_forward.1} parent=1 // pred_check
      _
    $region11: #{decoder_forward.1} parent=1 // pred_check_branch
      %43 = sbr.rel (0) target = $region13
    $region12: #{decoder_forward.1} parent=1 // pred_region
      %45 = vsyncadd [#allocation6], 0
      %s47 = sshll.u32 %s2, 4
      %s48 = int_to_ptr.hbm [resolvable:$true] %s47
      %s49 = sshll.u32 [#allocation7], 4
      %s50 = int_to_ptr.vmem [resolvable:$true] %s49
      %52 = dma.hbm_to_vmem [thread:$0]  %s48, 16, %s50, [#allocation6]
    $region13: #{decoder_forward.1} parent=1 // pred_fallthru
      _
    // Predicated region
    $region14: #{decoder_forward.1} parent=1 // pred_check
      _
    $region15: #{decoder_forward.1} parent=1 // pred_check_branch
      %54 = sbr.rel (0) target = $region17
    $region16: #{decoder_forward.1} parent=1 // pred_region
      %56 = vsyncadd [#allocation9], 0
      %s57 = sshll.u32 %s3, 4
      %s58 = int_to_ptr.hbm [resolvable:$true] %s57
      %s59 = sshll.u32 [#allocation8], 4
      %s60 = int_to_ptr.vmem [resolvable:$true] %s59
      %65 = dma.hbm_to_vmem [thread:$0]  %s58, 512, %s60, [#allocation9], 128, 128, 8
    $region17: #{decoder_forward.1} parent=1 // pred_fallthru
      _
    // Predicated region
    $region18: #{decoder_forward.1} parent=1 // pred_check
      _
    $region19: #{decoder_forward.1} parent=1 // pred_check_branch
      %67 = sbr.rel (0) target = $region21
    $region20: #{decoder_forward.1} parent=1 // pred_region
      _
    $region21: #{decoder_forward.1} parent=1 // pred_fallthru
      _
    // Predicated region
    $region22: #{decoder_forward.1} parent=1 // pred_check
      _
    $region23: #{decoder_forward.1} parent=1 // pred_check_branch
      %69 = sbr.rel (0) target = $region25
    $region24: #{decoder_forward.1} parent=1 // pred_region
      %71 = vsyncadd [#allocation9], 0
      %s72 = sshll.u32 %s5, 4
      %s73 = int_to_ptr.hbm [resolvable:$true] %s72
      %s74 = sshll.u32 [#allocation10], 4
      %s75 = int_to_ptr.vmem [resolvable:$true] %s74
      %80 = dma.hbm_to_vmem [thread:$0]  %s73, 1024, %s75, [#allocation9], 128, 128, 8
    $region25: #{decoder_forward.1} parent=1 // pred_fallthru
      _
    // Predicated region
    $region26: #{decoder_forward.1} parent=1 // pred_check
      _
    $region27: #{decoder_forward.1} parent=1 // pred_check_branch
      %82 = sbr.rel (0) target = $region29
    $region28: #{decoder_forward.1} parent=1 // pred_region
      _
    $region29: #{decoder_forward.1} parent=1 // pred_fallthru
      _
    // Predicated region
    $region30: #{decoder_forward.1} parent=1 // pred_check
      _
    $region31: #{decoder_forward.1} parent=1 // pred_check_branch
      %84 = sbr.rel (0) target = $region33
    $region32: #{decoder_forward.1} parent=1 // pred_region
      %86 = dma.done [#allocation3], 256
    $region33: #{decoder_forward.1} parent=1 // pred_fallthru
      _
    // Predicated region
    $region34: #{decoder_forward.1} parent=1 // pred_check
      _
    $region35: #{decoder_forward.1} parent=1 // pred_check_branch
      %88 = sbr.rel (0) target = $region37
    $region36: #{decoder_forward.1} parent=1 // pred_region
      %90 = dma.done [#allocation6], 512
    $region37: #{decoder_forward.1} parent=1 // pred_fallthru
      _
    // Predicated region
    $region38: #{decoder_forward.1} parent=1 // pred_check
      _
    $region39: #{decoder_forward.1} parent=1 // pred_check_branch
      %92 = sbr.rel (0) target = $region41
    $region40: #{decoder_forward.1} parent=1 // pred_region
      %94 = dma.done [#allocation6], 16
    $region41: #{decoder_forward.1} parent=1 // pred_fallthru
      _
    // Predicated region
    $region42: #{decoder_forward.1} parent=1 // pred_check
      _
    $region43: #{decoder_forward.1} parent=1 // pred_check_branch
      %96 = sbr.rel (0) target = $region45
    $region44: #{decoder_forward.1} parent=1 // pred_region
      %98 = dma.done [#allocation9], 512
    $region45: #{decoder_forward.1} parent=1 // pred_fallthru
      _
    // Predicated region
    $region46: #{decoder_forward.1} parent=1 // pred_check
      _
    $region47: #{decoder_forward.1} parent=1 // pred_check_branch
      %100 = sbr.rel (0) target = $region49
    $region48: #{decoder_forward.1} parent=1 // pred_region
      %102 = dma.done [#allocation9], 1024
    $region49: #{decoder_forward.1} parent=1 // pred_fallthru
      _
    %v103 = vld [vmem:[#allocation2] sm:$0xff]
    %v104 = vld [vmem:[#allocation2 + $0x8] sm:$0xff]
    %v105 = vld [vmem:[#allocation5] sm:$0xff]
    %v106 = vld [vmem:[#allocation5 + $0x8] sm:$0xff]
    %v107 = vld [vmem:[#allocation5 + $0x10] sm:$0xff]
    %v108 = vld [vmem:[#allocation5 + $0x18] sm:$0xff]
    %v109 = vld [vmem:[#allocation7] sm:$0x1]
    %v111 = vperm.slane %v109, 0
    %vm113 = vcmask 261120
    %v115 = vsel %vm113, %v103, 0
    %v118 = vsel %vm113, %v104, 0
    %120 = vmatpush.msra.mxu0 0.0
    %121 = vmatpush.msra.mxu0 0.0
    %122 = vmatpush.msra.mxu0 0.0
    %123 = vmatpush.msra.mxu0 0.0
    %124 = vmatpush.msra.mxu0 0.0
    %125 = vmatpush.msra.mxu0 0.0
    %126 = vmatpush.msra.mxu0 0.0
    %127 = vmatpush.msra.mxu0 0.0
    %128 = vmatpush.msra.mxu0 0.0
    %129 = vmatpush.msra.mxu0 0.0
    %130 = vmatpush.msra.mxu0 0.0
    %131 = vmatpush.msra.mxu0 0.0
    %132 = vmatpush.msra.mxu0 %v108
    %133 = vmatpush.msra.mxu0 %v107
    %134 = vmatpush.msra.mxu0 %v106
    %135 = vmatpush.msra.mxu0 %v105
    %136 = vmatmul.f32.gmra.mxu0 %v115
    %v137 = vpop.f32.mrf.mxu0
    %v138 = vadd.f32 %v111, %v137
    %139 = vmatmul.f32.gmra.mxu0 %v118
    %v140 = vpop.f32.mrf.mxu0
    %v141 = vadd.f32 %v111, %v140
    %142 = vdwg.mxu0
    %v143 = vmax.f32 %v138, 0.0
    %v144 = vmax.f32 %v141, 0.0
    %v145 = vld [vmem:[#allocation8] sm:$0xff]
    %v146 = vld [vmem:[#allocation8 + $0x8] sm:$0xff]
    %v147 = vld [vmem:[#allocation8 + $0x10] sm:$0xff]
    %v148 = vld [vmem:[#allocation8 + $0x18] sm:$0xff]
    %v149 = vld [vmem:[%s4] sm:$0x1]
    %v151 = vperm.slane %v149, 0
    %v154 = vsel %vm113, %v143, 0
    %v157 = vsel %vm113, %v144, 0
    %159 = vmatpush.msra.mxu0 0.0
    %160 = vmatpush.msra.mxu0 0.0
    %161 = vmatpush.msra.mxu0 0.0
    %162 = vmatpush.msra.mxu0 0.0
    %163 = vmatpush.msra.mxu0 0.0
    %164 = vmatpush.msra.mxu0 0.0
    %165 = vmatpush.msra.mxu0 0.0
    %166 = vmatpush.msra.mxu0 0.0
    %167 = vmatpush.msra.mxu0 0.0
    %168 = vmatpush.msra.mxu0 0.0
    %169 = vmatpush.msra.mxu0 0.0
    %170 = vmatpush.msra.mxu0 0.0
    %171 = vmatpush.msra.mxu0 %v148
    %172 = vmatpush.msra.mxu0 %v147
    %173 = vmatpush.msra.mxu0 %v146
    %174 = vmatpush.msra.mxu0 %v145
    %175 = vmatmul.f32.gmra.mxu0 %v154
    %v176 = vpop.f32.mrf.mxu0
    %v177 = vadd.f32 %v151, %v176
    %178 = vmatmul.f32.gmra.mxu0 %v157
    %v179 = vpop.f32.mrf.mxu0
    %v180 = vadd.f32 %v151, %v179
    %181 = vdwg.mxu0
    %v182 = vmax.f32 %v177, 0.0
    %v183 = vmax.f32 %v180, 0.0
    %v184 = vld [vmem:[#allocation10] sm:$0xff]
    %v185 = vld [vmem:[#allocation10 + $0x8] sm:$0xff]
    %v186 = vld [vmem:[#allocation10 + $0x10] sm:$0xff]
    %v187 = vld [vmem:[#allocation10 + $0x18] sm:$0xff]
    %v188 = vld [vmem:[#allocation10 + $0x20] sm:$0xff]
    %v189 = vld [vmem:[#allocation10 + $0x28] sm:$0xff]
    %v190 = vld [vmem:[#allocation10 + $0x30] sm:$0xff]
    %v191 = vld [vmem:[#allocation10 + $0x38] sm:$0xff]
    %v192 = vld [vmem:[%s6] sm:$0x1]
    %v194 = vperm.slane %v192, 0
    %vm196 = vcmask 523264
    %v198 = vsel %vm196, %v182, 0
    %v201 = vsel %vm196, %v183, 0
    %203 = vmatpush.msra.mxu0 0.0
    %204 = vmatpush.msra.mxu0 0.0
    %205 = vmatpush.msra.mxu0 0.0
    %206 = vmatpush.msra.mxu0 0.0
    %207 = vmatpush.msra.mxu0 0.0
    %208 = vmatpush.msra.mxu0 0.0
    %209 = vmatpush.msra.mxu0 0.0
    %210 = vmatpush.msra.mxu0 0.0
    %211 = vmatpush.msra.mxu0 %v191
    %212 = vmatpush.msra.mxu0 %v190
    %213 = vmatpush.msra.mxu0 %v189
    %214 = vmatpush.msra.mxu0 %v188
    %215 = vmatpush.msra.mxu0 %v187
    %216 = vmatpush.msra.mxu0 %v186
    %217 = vmatpush.msra.mxu0 %v185
    %218 = vmatpush.msra.mxu0 %v184
    %219 = vmatmul.f32.gmra.mxu0 %v198
    %v220 = vpop.f32.mrf.mxu0
    %v221 = vadd.f32 %v194, %v220
    %222 = vmatmul.f32.gmra.mxu0 %v201
    %v223 = vpop.f32.mrf.mxu0
    %v224 = vadd.f32 %v194, %v223
    %225 = vdwg.mxu0
    %v226 = vxor.u32 %v221, 2147483648
    %v227 = vxor.u32 %v224, 2147483648
    %v228 = vmul.f32 %v226, 1.442695
    %v229 = vpow.pop %v228
    %v230 = vmul.f32 %v227, 1.442695
    %v231 = vpow.pop %v230
    %v232 = vadd.f32 %v229, 1.0
    %v233 = vadd.f32 %v231, 1.0
    %v234 = vrcp.pop %v232
    %v235 = vmul.f32 %v232, %v234
    %v236 = vsub.f32 1.0, %v235
    %v237 = vmul.f32 %v234, %v236
    %v238 = vadd.f32 %v234, %v237
    %vm239 = vweird.f32 %v232
    %vm240 = vweird.f32 %v234
    %vm241 = vmor %vm239, %vm240
    %v242 = vsel %vm241, %v234, %v238
    %v243 = vand.u32 2147483647, %v232
    %vm244 = vcmp.eq.f32.partialorder %v243, 8.507059e+37
    %v245 = vand.u32 %v232, 2147483648
    %v246 = vor.u32 1.1754944e-38, %v245
    %v247 = vsel %vm244, %v246, %v242
    %v248 = vmul.f32 1.0, %v247
    %v249 = vrcp.pop %v233
    %v250 = vmul.f32 %v233, %v249
    %v251 = vsub.f32 1.0, %v250
    %v252 = vmul.f32 %v249, %v251
    %v253 = vadd.f32 %v249, %v252
    %vm254 = vweird.f32 %v233
    %vm255 = vweird.f32 %v249
    %vm256 = vmor %vm254, %vm255
    %v257 = vsel %vm256, %v249, %v253
    %v258 = vand.u32 2147483647, %v233
    %vm259 = vcmp.eq.f32.partialorder %v258, 8.507059e+37
    %v260 = vand.u32 %v233, 2147483648
    %v261 = vor.u32 1.1754944e-38, %v260
    %v262 = vsel %vm259, %v261, %v257
    %v263 = vmul.f32 1.0, %v262
    %264 = vst [vmem:[#allocation11] sm:$0xff] %v248
    %265 = vst [vmem:[#allocation11 + $0x8] sm:$0xff] %v263
    // Predicated region
    $region50: #{decoder_forward.1} parent=1 // pred_check
      _
    $region51: #{decoder_forward.1} parent=1 // pred_check_branch
      %267 = sbr.rel (0) target = $region53
    $region52: #{decoder_forward.1} parent=1 // pred_region
      %269 = vsyncadd [#allocation4], 0
      %s270 = sshll.u32 [#allocation11], 4
      %s271 = int_to_ptr.vmem [resolvable:$true] %s270
      %s272 = sshll.u32 %s7, 4
      %s273 = int_to_ptr.hbm [resolvable:$true] %s272
      %278 = dma.vmem_to_hbm [thread:$0]  %s271, 256, %s273, [#allocation4], 128, 128, 8
    $region53: #{decoder_forward.1} parent=1 // pred_fallthru
      _
    // Predicated region
    $region54: #{decoder_forward.1} parent=1 // pred_check
      _
    $region55: #{decoder_forward.1} parent=1 // pred_check_branch
      %280 = sbr.rel (0) target = $region57
    $region56: #{decoder_forward.1} parent=1 // pred_region
      %282 = dma.done [#allocation4], 256
    $region57: #{decoder_forward.1} parent=1 // pred_fallthru
      _
    %283 = vsyncpa [#allocation3], 1
    %284 = vsyncpa [#allocation6], 1
    %285 = vsyncpa [#allocation9], 1
    %286 = vsyncpa [#allocation4], 1

</llo_original>
